<compile_context>
chip_gen: v7x
topology: tpu7x:2x2x1
jax: 0.10.0
libtpu: 0.0.40
codegen_flags: <defaults>
</compile_context>

<pallas_src>
import jax
import jax.numpy as jnp
from jax.experimental import pallas as pl
from jax.experimental.pallas import tpu as pltpu


def _round_up(x, m):
    return ((x + m - 1) // m) * m


def _to_weights_dtype_kernel(x_ref, w_ref, b_ref, o_ref):
    # MXU matmul with f32 accumulation, bias add in f32 (VPU), then the
    # ToWeightsDType cast happens on the store.
    acc = jnp.dot(x_ref[...], w_ref[...], preferred_element_type=jnp.float32)
    acc = acc + b_ref[...]                       # (1, tn) broadcasts over (tm, tn)
    o_ref[...] = acc.astype(o_ref.dtype)


def _vmem_cap_bytes():
    """Per-generation scoped-VMEM cap (~75% of physical, >= 16 MiB)."""
    cap = 64 << 20  # conservative default (v7x physical VMEM per TC)
    try:
        info = pltpu.get_tpu_info()
        cap = int(getattr(info, "vmem_capacity_bytes", cap))
    except Exception:
        pass
    return max(int(cap * 3 // 4), 16 << 20)


class ToWeightsDTypeLinear:
    """ToWeightsDType(nn.Linear(H_in, H_out), dtype): y = (x @ W.T + b).to(dtype).

    weight: [H_out, H_in] (PyTorch nn.Linear layout), bias: [H_out].
    All weight-side work (transpose, dtype cast, lane padding) is done once here.
    """

    def __init__(self, weight, bias, out_dtype=jnp.bfloat16,
                 compute_dtype=jnp.bfloat16, tm_target=512, tn_target=512):
        weight = jnp.asarray(weight)
        bias = jnp.asarray(bias)
        self.out_dtype = jnp.dtype(out_dtype)
        self.compute_dtype = jnp.dtype(compute_dtype)
        self.tm_target = int(tm_target)

        H_out, H_in = weight.shape
        self.H_in, self.H_out = H_in, H_out

        # Lane-dense N tiling: tn multiple of 128, dividing the padded N.
        tn = min(int(tn_target), _round_up(H_out, 128))
        Np = _round_up(H_out, tn)
        self.tn, self.Np = tn, Np

        w_t = weight.T.astype(self.compute_dtype)            # [H_in, H_out]
        b2d = bias.astype(jnp.float32).reshape(1, H_out)     # [1, H_out]
        if Np != H_out:
            w_t = jnp.pad(w_t, ((0, 0), (0, Np - H_out)))
            b2d = jnp.pad(b2d, ((0, 0), (0, Np - H_out)))
        self.w = w_t                                          # [H_in, Np]
        self.b = b2d                                          # [1, Np] f32

    def __call__(self, x):
        assert x.shape[-1] == self.H_in
        lead = x.shape[:-1]
        M = 1
        for d in lead:
            M *= int(d)

        H_in, Np, tn = self.H_in, self.Np, self.tn
        # Cast of x fuses with surrounding XLA ops under jit; no padding of x —
        # the M tail tile is handled by the cdiv grid (masked boundary stores).
        x2d = x.reshape(M, H_in).astype(self.compute_dtype)

        in_isz = self.compute_dtype.itemsize
        out_isz = self.out_dtype.itemsize

        def budget(tm_):
            return (2 * (tm_ * H_in * in_isz        # x tile (double buffered)
                         + H_in * tn * in_isz       # w tile
                         + tn * 4                   # bias tile
                         + tm_ * tn * out_isz)      # output tile
                    + tm_ * tn * 4                  # f32 accumulator
                    + (4 << 20))                    # Mosaic internal scratch headroom

        cap = _vmem_cap_bytes()
        tm = min(self.tm_target, _round_up(M, 16))   # bf16 vreg packs 16 sublanes
        while budget(tm) > cap and tm > 16:
            tm //= 2
        tm = max(16, (tm // 16) * 16)
        vmem_bytes = int(min(max(budget(tm), 16 << 20), cap))

        grid_m = pl.cdiv(M, tm)
        grid_n = Np // tn
        grid = (grid_n, grid_m)   # N outer ("parallel"), M inner ("arbitrary")

        cost = pl.CostEstimate(
            flops=2 * M * H_in * Np,
            transcendentals=0,
            bytes_accessed=(grid_n * M * H_in * in_isz   # x streamed once per N tile
                            + H_in * Np * in_isz         # W resident across M
                            + Np * 4                     # bias
                            + M * Np * out_isz),         # output
        )

        y2d = pl.pallas_call(
            _to_weights_dtype_kernel,
            out_shape=jax.ShapeDtypeStruct((M, Np), self.out_dtype),
            grid_spec=pltpu.PrefetchScalarGridSpec(
                num_scalar_prefetch=0,
                grid=grid,
                in_specs=[
                    # activations stream over the inner M axis
                    pl.BlockSpec((tm, H_in), lambda j, i: (i, 0)),
                    # weight block resident across M (DMA'd once per N tile)
                    pl.BlockSpec((H_in, tn), lambda j, i: (0, j)),
                    # tiny bias block, also resident across M
                    pl.BlockSpec((1, tn), lambda j, i: (0, j)),
                ],
                out_specs=pl.BlockSpec((tm, tn), lambda j, i: (i, j)),
            ),
            compiler_params=pltpu.CompilerParams(
                dimension_semantics=("parallel", "arbitrary"),
                vmem_limit_bytes=vmem_bytes,
            ),
            cost_estimate=cost,
        )(x2d, self.w, self.b)

        return y2d[:, :self.H_out].reshape(*lead, self.H_out)


if __name__ == "__main__":
    B, S, H_IN, H_OUT = 2, 8, 32, 32

    key = jax.random.PRNGKey(0)
    kx, kw, kb = jax.random.split(key, 3)

    bound = 1.0 / (H_IN ** 0.5)
    x = jax.random.normal(kx, (B, S, H_IN), dtype=jnp.float32)
    # PyTorch nn.Linear layout: weight [H_out, H_in], bias [H_out].
    weight = jax.random.uniform(kw, (H_OUT, H_IN), minval=-bound, maxval=bound,
                                dtype=jnp.float32)
    bias = jax.random.uniform(kb, (H_OUT,), minval=-bound, maxval=bound,
                              dtype=jnp.float32)

    # 1) Strict-parity path: the wrapped Linear runs in f32, only the output is
    #    cast to bf16 (exact ToWeightsDType semantics).
    model_f32 = ToWeightsDTypeLinear(weight, bias, out_dtype=jnp.bfloat16,
                                     compute_dtype=jnp.float32)
    y_f32 = jax.block_until_ready(jax.jit(lambda a: model_f32(a))(x))
    y_ref_f32 = (jnp.einsum("bsh,oh->bso", x, weight) + bias).astype(jnp.bfloat16)
    assert y_f32.shape == (B, S, H_OUT) and y_f32.dtype == jnp.bfloat16
    assert jnp.allclose(y_f32.astype(jnp.float32), y_ref_f32.astype(jnp.float32),
                        atol=2e-2, rtol=2e-2)

    # 2) Fast path (default): bf16 activations/weights, f32 MXU accumulation.
    model_bf16 = ToWeightsDTypeLinear(weight, bias, out_dtype=jnp.bfloat16,
                                      compute_dtype=jnp.bfloat16)
    y_bf = jax.block_until_ready(jax.jit(lambda a: model_bf16(a))(x))
    x_q = x.astype(jnp.bfloat16).astype(jnp.float32)
    w_q = weight.astype(jnp.bfloat16).astype(jnp.float32)
    y_ref_bf = (jnp.einsum("bsh,oh->bso", x_q, w_q) + bias).astype(jnp.bfloat16)
    assert y_bf.shape == (B, S, H_OUT) and y_bf.dtype == jnp.bfloat16
    assert jnp.allclose(y_bf.astype(jnp.float32), y_ref_bf.astype(jnp.float32),
                        atol=2e-2, rtol=2e-2)

    print("KERNEL_OK")
</pallas_src>

<mosaic_0001>
module attributes {stable_mosaic.version = 11 : i64} {
  func.func @_to_weights_dtype_kernel(%arg0: i32, %arg1: i32, %arg2: memref<16x32xf32, #tpu.memory_space<vmem>>, %arg3: memref<32x128xf32, #tpu.memory_space<vmem>>, %arg4: memref<1x128xf32, #tpu.memory_space<vmem>>, %arg5: memref<16x128xbf16, #tpu.memory_space<vmem>>) attributes {dimension_semantics = [#tpu.dimension_semantics<parallel>, #tpu.dimension_semantics<arbitrary>], iteration_bounds = array<i64: 1, 1>, scalar_prefetch = 0 : i64, scratch_operands = 0 : i64, tpu.core_type = #tpu.core_type<tc>, window_params = [{transform_indices = @transform_0, window_bounds = array<i64: 16, 32>}, {transform_indices = @transform_1, window_bounds = array<i64: 32, 128>}, {transform_indices = @transform_2, window_bounds = array<i64: 1, 128>}, {transform_indices = @transform_3, window_bounds = array<i64: 16, 128>}]} {
    %c0 = arith.constant 0 : index
    %c0_0 = arith.constant 0 : index
    %0 = vector.load %arg2[%c0, %c0_0] : memref<16x32xf32, #tpu.memory_space<vmem>>, vector<16x32xf32>
    %c0_1 = arith.constant 0 : index
    %c0_2 = arith.constant 0 : index
    %1 = vector.load %arg3[%c0_1, %c0_2] : memref<32x128xf32, #tpu.memory_space<vmem>>, vector<32x128xf32>
    %cst = arith.constant dense<0.000000e+00> : vector<16x128xf32>
    %2 = tpu.matmul %0, %1, %cst {dimension_numbers = #tpu.dot_dimension_numbers<[1], [0], [0], [1], [0, 0, 1, 1], [], []>} : vector<16x32xf32>, vector<32x128xf32>, vector<16x128xf32> -> vector<16x128xf32>
    %c0_3 = arith.constant 0 : index
    %c0_4 = arith.constant 0 : index
    %3 = vector.load %arg4[%c0_3, %c0_4] : memref<1x128xf32, #tpu.memory_space<vmem>>, vector<1x128xf32>
    %4 = vector.broadcast %3 : vector<1x128xf32> to vector<16x128xf32>
    %5 = arith.addf %2, %4 : vector<16x128xf32>
    %6 = arith.truncf %5 : vector<16x128xf32> to vector<16x128xbf16>
    %c0_5 = arith.constant 0 : index
    %c0_6 = arith.constant 0 : index
    %7 = vector.load %arg5[%c0_5, %c0_6] : memref<16x128xbf16, #tpu.memory_space<vmem>>, vector<16x128xbf16>
    tpu.vector_store %arg5[%c0_5, %c0_6], %6 {strides = array<i32>} : memref<16x128xbf16, #tpu.memory_space<vmem>>, vector<16x128xbf16>,
    return
  }
  func.func @transform_0(%arg0: i32, %arg1: i32) -> (i32, i32) {
    %c0_i32 = arith.constant 0 : i32
    %c0_i32_0 = arith.constant 0 : i32
    return %arg1, %c0_i32 : i32, i32
  }
  func.func @transform_1(%arg0: i32, %arg1: i32) -> (i32, i32) {
    %c0_i32 = arith.constant 0 : i32
    %c0_i32_0 = arith.constant 0 : i32
    return %c0_i32, %arg0 : i32, i32
  }
  func.func @transform_2(%arg0: i32, %arg1: i32) -> (i32, i32) {
    %c0_i32 = arith.constant 0 : i32
    %c0_i32_0 = arith.constant 0 : i32
    return %c0_i32, %arg0 : i32, i32
  }
  func.func @transform_3(%arg0: i32, %arg1: i32) -> (i32, i32) {
    %c0_i32 = arith.constant 0 : i32
    return %arg1, %arg0 : i32, i32
  }
}

</mosaic_0001>

<llo_original>
// kernel: _lambda_.1
$region0: #{_lambda_.1}
  #allocation0 [shape = 'u32[]', space=smem, size = 0x4, offset = 0x4, fixed_abs, tag = 'smem constant byte address 0x4 - core index']
  #allocation1 [shape = 'u32[144,128]{1,0:T(1,128)}', space=vmem, size = 0x12000, scoped, tag = 'internal scratch']
  %s0 = inlined_call_operand.hbm [shape: f32[16,32], index: 0, kind: input, shape index: {}]
  %s1 = inlined_call_operand.hbm [shape: f32[32,128], index: 1, kind: input, shape index: {}]
  %s2 = inlined_call_operand.vmem [shape: f32[1,128], index: 2, kind: input, shape index: {}]
  %s3 = inlined_call_operand.vmem [shape: bf16[16,128], index: 3, kind: output, shape index: {}]
  %s4 = sld [smem:[#allocation0]]
  $region30: #{_lambda_.1} parent=0
    _
  %s6 = ssub.s32 1, %s4
  %s7 = scalar_select 0, %s6, %s4
  $region1: #{_lambda_.1} parent=0
    #allocation2 [shape = 'u8[8192]{0}', space=vmem, size = 0x2000, scoped, tag = 'input window, operand 0, single buffered']
    #allocation3 [shape = 's32[1]{0}', space=sflag, size = 0x4, scoped, tag = 'scoped memory for _lambda_.1']
    #allocation4 [shape = 'u8[16384]{0}', space=vmem, size = 0x4000, scoped, tag = 'input window, operand 1, single buffered']
    #allocation5 [shape = 's32[1]{0}', space=sflag, size = 0x4, scoped, tag = 'scoped memory for _lambda_.1']
    %8 = vsyncpa [#allocation3], 0
    %9 = vsyncpa [#allocation5], 0
    // Predicated region
    $region2: #{_lambda_.1} parent=1 // pred_check
      _
    $region3: #{_lambda_.1} parent=1 // pred_check_branch
      %11 = sbr.rel (0) target = $region5
    $region4: #{_lambda_.1} parent=1 // pred_region
      %s13 = ssub.s32 256, 256
      %14 = vsyncadd [#allocation3], %s13
      %s15 = sshll.u32 [#allocation2], 4
      %s16 = int_to_ptr.vmem [resolvable:$true] %s15
      %21 = dma.hbm_to_vmem [thread:$0]  %s0, 256, %s16, [#allocation3], 128, 128, 8
    $region5: #{_lambda_.1} parent=1 // pred_fallthru
      _
    // Predicated region
    $region6: #{_lambda_.1} parent=1 // pred_check
      _
    $region7: #{_lambda_.1} parent=1 // pred_check_branch
      %23 = sbr.rel (0) target = $region9
    $region8: #{_lambda_.1} parent=1 // pred_region
      %s25 = ssub.s32 512, 512
      %26 = vsyncadd [#allocation5], %s25
      %s27 = sshll.u32 [#allocation4], 4
      %s28 = int_to_ptr.vmem [resolvable:$true] %s27
      %33 = dma.hbm_to_vmem [thread:$0]  %s1, 512, %s28, [#allocation5], 128, 128, 8
    $region9: #{_lambda_.1} parent=1 // pred_fallthru
      _
    // Predicated region
    $region10: #{_lambda_.1} parent=1 // pred_check
      _
    $region11: #{_lambda_.1} parent=1 // pred_check_branch
      %35 = sbr.rel (0) target = $region13
    $region12: #{_lambda_.1} parent=1 // pred_region
      _
    $region13: #{_lambda_.1} parent=1 // pred_fallthru
      _
    // Predicated region
    $region14: #{_lambda_.1} parent=1 // pred_check
      _
    $region15: #{_lambda_.1} parent=1 // pred_check_branch
      %37 = sbr.rel (0) target = $region17
    $region16: #{_lambda_.1} parent=1 // pred_region
      %38 = dma.done [#allocation3], 256
    $region17: #{_lambda_.1} parent=1 // pred_fallthru
      _
    // Predicated region
    $region18: #{_lambda_.1} parent=1 // pred_check
      _
    $region19: #{_lambda_.1} parent=1 // pred_check_branch
      %40 = sbr.rel (0) target = $region21
    $region20: #{_lambda_.1} parent=1 // pred_region
      %41 = dma.done [#allocation5], 512
    $region21: #{_lambda_.1} parent=1 // pred_fallthru
      _
    %v42 = vld [vmem:[#allocation2] sm:$0xff]
    %v43 = vld [vmem:[#allocation2 + $0x8] sm:$0xff]
    %v44 = vld [vmem:[#allocation4] sm:$0xff]
    %v45 = vld [vmem:[#allocation4 + $0x8] sm:$0xff]
    %v46 = vld [vmem:[#allocation4 + $0x10] sm:$0xff]
    %v47 = vld [vmem:[#allocation4 + $0x18] sm:$0xff]
    %v48 = vld [vmem:[%s2] sm:$0x1]
    %v50 = vlaneseq
    %v51 = vshrl.u32 %v50, 7
    %v52 = vsub.s32 0, %v51
    %v53 = vrot.slane %v48, %v52
    %vm55 = vcmask 261120
    %v57 = vsel %vm55, %v42, 0
    %v60 = vsel %vm55, %v43, 0
    %62 = vmatprep.subr.mxu0 0.0
    %63 = vmatpush1.msra.mxu0 %v44
    %64 = vmatprep.subr.mxu0 0.0
    %65 = vmatpush1.msra.mxu0 %v45
    %66 = vmatprep.subr.mxu0 0.0
    %67 = vmatpush1.msra.mxu0 %v46
    %68 = vmatprep.subr.mxu0 0.0
    %69 = vmatpush1.msra.mxu0 %v47
    %70 = vmatprep.subr.mxu0 0.0
    %71 = vmatpush1.msra.mxu0 0.0
    %72 = vmatprep.subr.mxu0 0.0
    %73 = vmatpush1.msra.mxu0 0.0
    %74 = vmatprep.subr.mxu0 0.0
    %75 = vmatpush1.msra.mxu0 0.0
    %76 = vmatprep.subr.mxu0 0.0
    %77 = vmatpush1.msra.mxu0 0.0
    %78 = vmatprep.subr.mxu0 0.0
    %79 = vmatpush1.msra.mxu0 0.0
    %80 = vmatprep.subr.mxu0 0.0
    %81 = vmatpush1.msra.mxu0 0.0
    %82 = vmatprep.subr.mxu0 0.0
    %83 = vmatpush1.msra.mxu0 0.0
    %84 = vmatprep.subr.mxu0 0.0
    %85 = vmatpush1.msra.mxu0 0.0
    %86 = vmatprep.subr.mxu0 0.0
    %87 = vmatpush1.msra.mxu0 0.0
    %88 = vmatprep.subr.mxu0 0.0
    %89 = vmatpush1.msra.mxu0 0.0
    %90 = vmatprep.subr.mxu0 0.0
    %91 = vmatpush1.msra.mxu0 0.0
    %92 = vmatprep.subr.mxu0 0.0
    %93 = vmatpush1.msra.mxu0 0.0
    %94 = vmatprep.subr.mxu0 0.0
    %95 = vmatpush1.msra.mxu0 0.0
    %96 = vmatprep.subr.mxu0 0.0
    %97 = vmatpush1.msra.mxu0 0.0
    %98 = vmatprep.subr.mxu0 0.0
    %99 = vmatpush1.msra.mxu0 0.0
    %100 = vmatprep.subr.mxu0 0.0
    %101 = vmatpush1.msra.mxu0 0.0
    %102 = vmatprep.subr.mxu0 0.0
    %103 = vmatpush1.msra.mxu0 0.0
    %104 = vmatprep.subr.mxu0 0.0
    %105 = vmatpush1.msra.mxu0 0.0
    %106 = vmatprep.subr.mxu0 0.0
    %107 = vmatpush1.msra.mxu0 0.0
    %108 = vmatprep.subr.mxu0 0.0
    %109 = vmatpush1.msra.mxu0 0.0
    %110 = vmatprep.subr.mxu0 0.0
    %111 = vmatpush1.msra.mxu0 0.0
    %112 = vmatprep.subr.mxu0 0.0
    %113 = vmatpush1.msra.mxu0 0.0
    %114 = vmatprep.subr.mxu0 0.0
    %115 = vmatpush1.msra.mxu0 0.0
    %116 = vmatprep.subr.mxu0 0.0
    %117 = vmatpush1.msra.mxu0 0.0
    %118 = vmatprep.subr.mxu0 0.0
    %119 = vmatpush1.msra.mxu0 0.0
    %120 = vmatprep.subr.mxu0 0.0
    %121 = vmatpush1.msra.mxu0 0.0
    %122 = vmatprep.subr.mxu0 0.0
    %123 = vmatpush1.msra.mxu0 0.0
    %124 = vmatprep.subr.mxu0 0.0
    %125 = vmatpush1.msra.mxu0 0.0
    %126 = vmatprep.mubr.f32.mxu0 0.0
    %127 = vmatmul.mubr.f32.gmra.mrb[0].mxu0 %v57
    %v128 = vpop.f32.mrb[0].mxu0
    %v129 = vadd.f32 %v53, %v128
    %v130 = vpop.f32.mrb[0].mxu0
    %131 = vmatprep.mubr.f32.mxu0 0.0
    %132 = vmatmul.mubr.f32.gmra.mrb[0].mxu0 %v60
    %v133 = vpop.f32.mrb[0].mxu0
    %v134 = vadd.f32 %v53, %v133
    %v135 = vpop.f32.mrb[0].mxu0
    %136 = vdwg.mxu0
    %v137 = vpack.c.bf16 %v134, %v129
    %v139 = vunpack.c.l.b16 %v137
    %v140 = vunpack.c.h.b16 %v137
    %v141 = vpack.c.b16 %v139, %v139
    %v142 = vpack.c.b16 %v140, %v140
    %145 = vst [vmem:[%s3] sm:$0xf] %v141
    %146 = vst [vmem:[%s3 + $0x4] sm:$0xf] %v142
    // Predicated region
    $region22: #{_lambda_.1} parent=1 // pred_check
      _
    $region23: #{_lambda_.1} parent=1 // pred_check_branch
      %148 = sbr.rel (0) target = $region25
    $region24: #{_lambda_.1} parent=1 // pred_region
      _
    $region25: #{_lambda_.1} parent=1 // pred_fallthru
      _
    // Predicated region
    $region26: #{_lambda_.1} parent=1 // pred_check
      _
    $region27: #{_lambda_.1} parent=1 // pred_check_branch
      %150 = sbr.rel (0) target = $region29
    $region28: #{_lambda_.1} parent=1 // pred_region
      _
    $region29: #{_lambda_.1} parent=1 // pred_fallthru
      _
    %151 = vsyncpa [#allocation3], 1
    %152 = vsyncpa [#allocation5], 1

</llo_original>
